<compile_context>
chip_gen: v5e
topology: v5e:2x2
jax: 0.10.0
libtpu: 0.0.40
codegen_flags: <defaults>
</compile_context>

<pallas_src>
import jax
import jax.numpy as jnp
from jax.experimental import pallas as pl
from jax.experimental.pallas import tpu as pltpu


def dummy_model_kernel(x_ref, w1_ref, b1_ref, w2_ref, b2_ref, out_ref):
    # conv (expanded as a matmul) + bias + ReLU: (B,256)@(256,256) -> (B,256)
    h = jnp.dot(x_ref[...], w1_ref[...], preferred_element_type=jnp.float32)
    h = jnp.maximum(h + b1_ref[...], 0.0)
    # fc as a single contraction: (B,256)@(256,128) -> (B,128), lane-dense write
    out = jnp.dot(h, w2_ref[...], preferred_element_type=jnp.float32)
    out_ref[...] = out + b2_ref[...]


def dummy_model_forward(x, conv_w, conv_b, fc_w, fc_b, *, stride=4, ksize=2, lane_pad=128):
    B, Cin, H, W = x.shape
    assert Cin == 1
    OH = (H - ksize) // stride + 1
    OW = (W - ksize) // stride + 1
    S = OH * OW                      # 64
    K4 = ksize * ksize               # 4
    Cout = conv_w.shape[0]           # 4
    NC = fc_w.shape[0]               # 10
    NCp = max(lane_pad, NC)          # 128 (lane-dense output)
    f32 = jnp.float32

    # --- glue (fused into the pallas_call inputs under jit) ---------------------------
    # im2col: x_flat[b, k*S + (oh*OW + ow)] = x[b, 0, oh*stride + kh, ow*stride + kw]
    slices = [x[:, 0, kh::stride, kw::stride][:, :OH, :OW]
              for kh in range(ksize) for kw in range(ksize)]
    x_flat = jnp.stack(slices, axis=1).reshape(B, K4 * S).astype(f32)          # (B, 256)

    # Expanded conv weight: w1[k*S+s', c*S+s] = conv_w[c, k] * (s' == s)
    cw = conv_w.reshape(Cout, K4).astype(f32)                                  # (4, 4)
    eye = jnp.eye(S, dtype=f32)                                                # (64, 64)
    w1 = (cw.T[:, None, :, None] * eye[None, :, None, :]).reshape(K4 * S, Cout * S)
    b1 = jnp.repeat(conv_b.astype(f32), S).reshape(1, Cout * S)                # (1, 256)

    # FC weight: channel-major flatten order matches PyTorch .view(B, -1); pad to 128 lanes.
    w2 = jnp.pad(fc_w.astype(f32).T, ((0, 0), (0, NCp - NC)))                  # (256, 128)
    b2 = jnp.pad(fc_b.astype(f32).reshape(1, NC), ((0, 0), (0, NCp - NC)))     # (1, 128)

    flops = 2 * B * (K4 * S) * (Cout * S) + 2 * B * (Cout * S) * NCp
    bytes_accessed = 4 * (x_flat.size + w1.size + b1.size + w2.size + b2.size + B * NCp)

    vmem = pl.BlockSpec(memory_space=pltpu.MemorySpace.VMEM)
    out_padded = pl.pallas_call(
        dummy_model_kernel,
        out_shape=jax.ShapeDtypeStruct((B, NCp), f32),
        in_specs=[vmem, vmem, vmem, vmem, vmem],
        out_specs=vmem,
        compiler_params=pltpu.CompilerParams(
            allow_input_fusion=[True, True, True, True, True]),
        cost_estimate=pl.CostEstimate(
            flops=flops, transcendentals=0, bytes_accessed=bytes_accessed),
    )(x_flat, w1, b1, w2, b2)
    return out_padded[:, :NC]


if __name__ == "__main__":
    key = jax.random.PRNGKey(0)
    kx, kcw, kcb, kfw, kfb = jax.random.split(key, 5)

    B, Cin, H, W = 2, 1, 32, 32          # 32x32 -> conv(k=2, s=4) -> 8x8, matching fc(4*8*8)
    Cout, K, stride = 4, 2, 4
    OH = OW = (H - K) // stride + 1      # 8
    NC = 10

    x = jax.random.normal(kx, (B, Cin, H, W), dtype=jnp.float32)

    # deterministic PyTorch-style uniform(+-1/sqrt(fan_in)) init
    conv_bound = 1.0 / (Cin * K * K) ** 0.5
    conv_w = jax.random.uniform(kcw, (Cout, Cin, K, K), jnp.float32, -conv_bound, conv_bound)
    conv_b = jax.random.uniform(kcb, (Cout,), jnp.float32, -conv_bound, conv_bound)

    fc_in = Cout * OH * OW               # 256
    fc_bound = 1.0 / fc_in ** 0.5
    fc_w = jax.random.uniform(kfw, (NC, fc_in), jnp.float32, -fc_bound, fc_bound)
    fc_b = jax.random.uniform(kfb, (NC,), jnp.float32, -fc_bound, fc_bound)

    fwd = jax.jit(dummy_model_forward)   # lets XLA fuse the im2col / weight-expansion glue
    out = jax.block_until_ready(fwd(x, conv_w, conv_b, fc_w, fc_b))

    # pure-JAX reference (mirrors the PyTorch forward exactly)
    conv_ref = jax.lax.conv_general_dilated(
        x, conv_w, window_strides=(stride, stride), padding="VALID",
        dimension_numbers=("NCHW", "OIHW", "NCHW"))
    ref = jnp.maximum(conv_ref + conv_b.reshape(1, Cout, 1, 1), 0.0)
    ref = ref.reshape(B, -1) @ fc_w.T + fc_b

    assert out.shape == (B, NC)
    assert jnp.allclose(out, ref, atol=1e-4, rtol=1e-4)
    print("KERNEL_OK")
</pallas_src>

<mosaic_0001>
module attributes {stable_mosaic.version = 11 : i64} {
  func.func @dummy_model_kernel(%arg0: memref<2x256xf32, #tpu.memory_space<vmem>>, %arg1: memref<256x256xf32, #tpu.memory_space<vmem>>, %arg2: memref<1x256xf32, #tpu.memory_space<vmem>>, %arg3: memref<256x128xf32, #tpu.memory_space<vmem>>, %arg4: memref<1x128xf32, #tpu.memory_space<vmem>>, %arg5: memref<2x128xf32, #tpu.memory_space<vmem>>) attributes {dimension_semantics = [], scalar_prefetch = 0 : i64, scratch_operands = 0 : i64, tpu.core_type = #tpu.core_type<tc>} {
    %c0 = arith.constant 0 : index
    %c0_0 = arith.constant 0 : index
    %0 = vector.load %arg0[%c0, %c0_0] : memref<2x256xf32, #tpu.memory_space<vmem>>, vector<2x256xf32>
    %c0_1 = arith.constant 0 : index
    %c0_2 = arith.constant 0 : index
    %1 = vector.load %arg1[%c0_1, %c0_2] : memref<256x256xf32, #tpu.memory_space<vmem>>, vector<256x256xf32>
    %cst = arith.constant dense<0.000000e+00> : vector<2x256xf32>
    %2 = tpu.matmul %0, %1, %cst {dimension_numbers = #tpu.dot_dimension_numbers<[1], [0], [0], [1], [0, 0, 1, 1], [], []>} : vector<2x256xf32>, vector<256x256xf32>, vector<2x256xf32> -> vector<2x256xf32>
    %c0_3 = arith.constant 0 : index
    %c0_4 = arith.constant 0 : index
    %3 = vector.load %arg2[%c0_3, %c0_4] : memref<1x256xf32, #tpu.memory_space<vmem>>, vector<1x256xf32>
    %4 = vector.broadcast %3 : vector<1x256xf32> to vector<2x256xf32>
    %5 = arith.addf %2, %4 : vector<2x256xf32>
    %cst_5 = arith.constant 0.000000e+00 : f32
    %6 = vector.broadcast %cst_5 : f32 to vector<2x256xf32>
    %7 = arith.maximumf %5, %6 : vector<2x256xf32>
    %c0_6 = arith.constant 0 : index
    %c0_7 = arith.constant 0 : index
    %8 = vector.load %arg3[%c0_6, %c0_7] : memref<256x128xf32, #tpu.memory_space<vmem>>, vector<256x128xf32>
    %cst_8 = arith.constant dense<0.000000e+00> : vector<2x128xf32>
    %9 = tpu.matmul %7, %8, %cst_8 {dimension_numbers = #tpu.dot_dimension_numbers<[1], [0], [0], [1], [0, 0, 1, 1], [], []>} : vector<2x256xf32>, vector<256x128xf32>, vector<2x128xf32> -> vector<2x128xf32>
    %c0_9 = arith.constant 0 : index
    %c0_10 = arith.constant 0 : index
    %10 = vector.load %arg4[%c0_9, %c0_10] : memref<1x128xf32, #tpu.memory_space<vmem>>, vector<1x128xf32>
    %11 = vector.broadcast %10 : vector<1x128xf32> to vector<2x128xf32>
    %12 = arith.addf %9, %11 : vector<2x128xf32>
    %c0_11 = arith.constant 0 : index
    %c0_12 = arith.constant 0 : index
    %13 = vector.load %arg5[%c0_11, %c0_12] : memref<2x128xf32, #tpu.memory_space<vmem>>, vector<2x128xf32>
    tpu.vector_store %arg5[%c0_11, %c0_12], %12 {strides = array<i32>} : memref<2x128xf32, #tpu.memory_space<vmem>>, vector<2x128xf32>,
    return
  }
}

</mosaic_0001>

<llo_original>
// kernel: dummy_model_forward.2
$region0: #{dummy_model_forward.2}
  #allocation0 [shape = 'u32[]', space=smem, size = 0x4, offset = 0x4, fixed_abs, tag = 'smem constant byte address 0x4 - core index']
  #allocation1 [shape = 'u32[72,128]{1,0:T(1,128)}', space=vmem, size = 0x9000, scoped, tag = 'internal scratch']
  #allocation2 [shape = 'u32[2048]{0}', space=vmem, size = 0x2000, scoped, tag = 'scoped memory for dummy_model_forward.2']
  #allocation3 [shape = 'u32[2048]{0}', space=vmem, size = 0x2000, scoped, tag = 'scoped memory for dummy_model_forward.2']
  #allocation4 [shape = 'u32[2048]{0}', space=vmem, size = 0x2000, scoped, tag = 'scoped memory for dummy_model_forward.2']
  #allocation5 [shape = 'u32[2048]{0}', space=vmem, size = 0x2000, scoped, tag = 'scoped memory for dummy_model_forward.2']
  #allocation6 [shape = 'u32[2048]{0}', space=vmem, size = 0x2000, scoped, tag = 'scoped memory for dummy_model_forward.2']
  #allocation7 [shape = 'u32[2048]{0}', space=vmem, size = 0x2000, scoped, tag = 'scoped memory for dummy_model_forward.2']
  #allocation8 [shape = 'u32[2048]{0}', space=vmem, size = 0x2000, scoped, tag = 'scoped memory for dummy_model_forward.2']
  #allocation9 [shape = 'u32[2048]{0}', space=vmem, size = 0x2000, scoped, tag = 'scoped memory for dummy_model_forward.2']
  #allocation10 [shape = 'u32[2048]{0}', space=vmem, size = 0x2000, scoped, tag = 'scoped memory for dummy_model_forward.2']
  #allocation11 [shape = 'u32[2048]{0}', space=vmem, size = 0x2000, scoped, tag = 'scoped memory for dummy_model_forward.2']
  %s0 = inlined_call_operand.vmem [shape: f32[2,256], index: 0, kind: input, shape index: {}]
  %s1 = inlined_call_operand.vmem [shape: f32[256,256], index: 1, kind: input, shape index: {}]
  %s2 = inlined_call_operand.vmem [shape: f32[1,256], index: 2, kind: input, shape index: {}]
  %s3 = inlined_call_operand.vmem [shape: f32[256,10], index: 3, kind: input, shape index: {}]
  %s4 = inlined_call_operand.<no memory space> [shape: f32[], index: 4, kind: input, shape index: {}]
  %s5 = inlined_call_operand.vmem [shape: f32[1,10], index: 5, kind: input, shape index: {}]
  %s6 = inlined_call_operand.hbm [shape: f32[2,128], index: 6, kind: output, shape index: {}]
  %s7 = sld [smem:[#allocation0]]
  $region30: #{dummy_model_forward.2} parent=0
    _
  %s9 = ssub.s32 1, %s7
  %s10 = scalar_select 0, %s9, %s7
  %v11 = vstv %s4
  %v12 = vstv %s4
  $region1: #{dummy_model_forward.2} parent=0
    #allocation12 [shape = 'u8[1024]{0}', space=vmem, size = 0x400, scoped, tag = 'output window, operand 0, single buffered']
    #allocation13 [shape = 's32[1]{0}', space=sflag, size = 0x4, scoped, tag = 'scoped memory for dummy_model_forward.2']
    #allocation14 [shape = 'u8[131072]{0}', space=vmem, size = 0x20000, dematerialized = true, scoped, tag = 'FusionAdapter Buffer %fusion.1 = f32[256,128]{1,0:T(8,128)} fusion(%param_3.6, %param_4.5), kind=kLoop, calls=%fused_computation.2.clone, metadata={op_name="jit(dummy_model_forward)/jit(_pad)/pad" stack_frame_id=16}']
    #allocation15 [shape = 'u8[512]{0}', space=vmem, size = 0x400, dematerialized = true, scoped, tag = 'FusionAdapter Buffer %fusion.3 = f32[1,128]{1,0:T(1,128)} fusion(%param_5.1, %param_4.5), kind=kLoop, calls=%fused_computation.6.clone, metadata={op_name="jit(dummy_model_forward)/jit(_pad)/pad" stack_frame_id=18}']
    %13 = vsyncpa [#allocation13], 0
    // Predicated region
    $region2: #{dummy_model_forward.2} parent=1 // pred_check
      _
    $region3: #{dummy_model_forward.2} parent=1 // pred_check_branch
      %15 = sbr.rel (0) target = $region5
    $region4: #{dummy_model_forward.2} parent=1 // pred_region
      _
    $region5: #{dummy_model_forward.2} parent=1 // pred_fallthru
      _
    // Predicated region
    $region6: #{dummy_model_forward.2} parent=1 // pred_check
      _
    $region7: #{dummy_model_forward.2} parent=1 // pred_check_branch
      %17 = sbr.rel (0) target = $region9
    $region8: #{dummy_model_forward.2} parent=1 // pred_region
      _
    $region9: #{dummy_model_forward.2} parent=1 // pred_fallthru
      _
    // Predicated region
    $region10: #{dummy_model_forward.2} parent=1 // pred_check
      _
    $region11: #{dummy_model_forward.2} parent=1 // pred_check_branch
      %19 = sbr.rel (0) target = $region13
    $region12: #{dummy_model_forward.2} parent=1 // pred_region
      _
    $region13: #{dummy_model_forward.2} parent=1 // pred_fallthru
      _
    // Predicated region
    $region14: #{dummy_model_forward.2} parent=1 // pred_check
      _
    $region15: #{dummy_model_forward.2} parent=1 // pred_check_branch
      %21 = sbr.rel (0) target = $region17
    $region16: #{dummy_model_forward.2} parent=1 // pred_region
      _
    $region17: #{dummy_model_forward.2} parent=1 // pred_fallthru
      _
    // Predicated region
    $region18: #{dummy_model_forward.2} parent=1 // pred_check
      _
    $region19: #{dummy_model_forward.2} parent=1 // pred_check_branch
      %23 = sbr.rel (0) target = $region21
    $region20: #{dummy_model_forward.2} parent=1 // pred_region
      _
    $region21: #{dummy_model_forward.2} parent=1 // pred_fallthru
      _
    %v24 = vld [vmem:[%s3] sm:$0xff]
    %v25 = vlaneseq
    %v26 = vand.u32 %v25, 127
    %vm28 = vcmp.lt.s32.totalorder %v26, 10
    %v29 = vsel %vm28, %v24, %v11
    %s31 = ssub.s32 256, 1
    %32 = vst [vmem:[#allocation14] sm:%s31] %v29
    %s33 = scalar_lea.vmem %s3, 8
    %v34 = vld [vmem:[%s33] sm:$0xff]
    %v35 = vlaneseq
    %v36 = vand.u32 %v35, 127
    %vm38 = vcmp.lt.s32.totalorder %v36, 10
    %v39 = vsel %vm38, %v34, %v11
    %s40 = scalar_lea.vmem [#allocation14], 8
    %s42 = ssub.s32 256, 1
    %43 = vst [vmem:[%s40] sm:%s42] %v39
    %s44 = scalar_lea.vmem %s3, 16
    %v45 = vld [vmem:[%s44] sm:$0xff]
    %v46 = vlaneseq
    %v47 = vand.u32 %v46, 127
    %vm49 = vcmp.lt.s32.totalorder %v47, 10
    %v50 = vsel %vm49, %v45, %v11
    %s51 = scalar_lea.vmem [#allocation14], 16
    %s53 = ssub.s32 256, 1
    %54 = vst [vmem:[%s51] sm:%s53] %v50
    %s55 = scalar_lea.vmem %s3, 24
    %v56 = vld [vmem:[%s55] sm:$0xff]
    %v57 = vlaneseq
    %v58 = vand.u32 %v57, 127
    %vm60 = vcmp.lt.s32.totalorder %v58, 10
    %v61 = vsel %vm60, %v56, %v11
    %s62 = scalar_lea.vmem [#allocation14], 24
    %s64 = ssub.s32 256, 1
    %65 = vst [vmem:[%s62] sm:%s64] %v61
    %s66 = scalar_lea.vmem %s3, 32
    %v67 = vld [vmem:[%s66] sm:$0xff]
    %v68 = vlaneseq
    %v69 = vand.u32 %v68, 127
    %vm71 = vcmp.lt.s32.totalorder %v69, 10
    %v72 = vsel %vm71, %v67, %v11
    %s73 = scalar_lea.vmem [#allocation14], 32
    %s75 = ssub.s32 256, 1
    %76 = vst [vmem:[%s73] sm:%s75] %v72
    %s77 = scalar_lea.vmem %s3, 40
    %v78 = vld [vmem:[%s77] sm:$0xff]
    %v79 = vlaneseq
    %v80 = vand.u32 %v79, 127
    %vm82 = vcmp.lt.s32.totalorder %v80, 10
    %v83 = vsel %vm82, %v78, %v11
    %s84 = scalar_lea.vmem [#allocation14], 40
    %s86 = ssub.s32 256, 1
    %87 = vst [vmem:[%s84] sm:%s86] %v83
    %s88 = scalar_lea.vmem %s3, 48
    %v89 = vld [vmem:[%s88] sm:$0xff]
    %v90 = vlaneseq
    %v91 = vand.u32 %v90, 127
    %vm93 = vcmp.lt.s32.totalorder %v91, 10
    %v94 = vsel %vm93, %v89, %v11
    %s95 = scalar_lea.vmem [#allocation14], 48
    %s97 = ssub.s32 256, 1
    %98 = vst [vmem:[%s95] sm:%s97] %v94
    %s99 = scalar_lea.vmem %s3, 56
    %v100 = vld [vmem:[%s99] sm:$0xff]
    %v101 = vlaneseq
    %v102 = vand.u32 %v101, 127
    %vm104 = vcmp.lt.s32.totalorder %v102, 10
    %v105 = vsel %vm104, %v100, %v11
    %s106 = scalar_lea.vmem [#allocation14], 56
    %s108 = ssub.s32 256, 1
    %109 = vst [vmem:[%s106] sm:%s108] %v105
    %s110 = scalar_lea.vmem %s3, 64
    %v111 = vld [vmem:[%s110] sm:$0xff]
    %v112 = vlaneseq
    %v113 = vand.u32 %v112, 127
    %vm115 = vcmp.lt.s32.totalorder %v113, 10
    %v116 = vsel %vm115, %v111, %v11
    %s117 = scalar_lea.vmem [#allocation14], 64
    %s119 = ssub.s32 256, 1
    %120 = vst [vmem:[%s117] sm:%s119] %v116
    %s121 = scalar_lea.vmem %s3, 72
    %v122 = vld [vmem:[%s121] sm:$0xff]
    %v123 = vlaneseq
    %v124 = vand.u32 %v123, 127
    %vm126 = vcmp.lt.s32.totalorder %v124, 10
    %v127 = vsel %vm126, %v122, %v11
    %s128 = scalar_lea.vmem [#allocation14], 72
    %s130 = ssub.s32 256, 1
    %131 = vst [vmem:[%s128] sm:%s130] %v127
    %s132 = scalar_lea.vmem %s3, 80
    %v133 = vld [vmem:[%s132] sm:$0xff]
    %v134 = vlaneseq
    %v135 = vand.u32 %v134, 127
    %vm137 = vcmp.lt.s32.totalorder %v135, 10
    %v138 = vsel %vm137, %v133, %v11
    %s139 = scalar_lea.vmem [#allocation14], 80
    %s141 = ssub.s32 256, 1
    %142 = vst [vmem:[%s139] sm:%s141] %v138
    %s143 = scalar_lea.vmem %s3, 88
    %v144 = vld [vmem:[%s143] sm:$0xff]
    %v145 = vlaneseq
    %v146 = vand.u32 %v145, 127
    %vm148 = vcmp.lt.s32.totalorder %v146, 10
    %v149 = vsel %vm148, %v144, %v11
    %s150 = scalar_lea.vmem [#allocation14], 88
    %s152 = ssub.s32 256, 1
    %153 = vst [vmem:[%s150] sm:%s152] %v149
    %s154 = scalar_lea.vmem %s3, 96
    %v155 = vld [vmem:[%s154] sm:$0xff]
    %v156 = vlaneseq
    %v157 = vand.u32 %v156, 127
    %vm159 = vcmp.lt.s32.totalorder %v157, 10
    %v160 = vsel %vm159, %v155, %v11
    %s161 = scalar_lea.vmem [#allocation14], 96
    %s163 = ssub.s32 256, 1
    %164 = vst [vmem:[%s161] sm:%s163] %v160
    %s165 = scalar_lea.vmem %s3, 104
    %v166 = vld [vmem:[%s165] sm:$0xff]
    %v167 = vlaneseq
    %v168 = vand.u32 %v167, 127
    %vm170 = vcmp.lt.s32.totalorder %v168, 10
    %v171 = vsel %vm170, %v166, %v11
    %s172 = scalar_lea.vmem [#allocation14], 104
    %s174 = ssub.s32 256, 1
    %175 = vst [vmem:[%s172] sm:%s174] %v171
    %s176 = scalar_lea.vmem %s3, 112
    %v177 = vld [vmem:[%s176] sm:$0xff]
    %v178 = vlaneseq
    %v179 = vand.u32 %v178, 127
    %vm181 = vcmp.lt.s32.totalorder %v179, 10
    %v182 = vsel %vm181, %v177, %v11
    %s183 = scalar_lea.vmem [#allocation14], 112
    %s185 = ssub.s32 256, 1
    %186 = vst [vmem:[%s183] sm:%s185] %v182
    %s187 = scalar_lea.vmem %s3, 120
    %v188 = vld [vmem:[%s187] sm:$0xff]
    %v189 = vlaneseq
    %v190 = vand.u32 %v189, 127
    %vm192 = vcmp.lt.s32.totalorder %v190, 10
    %v193 = vsel %vm192, %v188, %v11
    %s194 = scalar_lea.vmem [#allocation14], 120
    %s196 = ssub.s32 256, 1
    %197 = vst [vmem:[%s194] sm:%s196] %v193
    %s198 = scalar_lea.vmem %s3, 128
    %v199 = vld [vmem:[%s198] sm:$0xff]
    %v200 = vlaneseq
    %v201 = vand.u32 %v200, 127
    %vm203 = vcmp.lt.s32.totalorder %v201, 10
    %v204 = vsel %vm203, %v199, %v11
    %s205 = scalar_lea.vmem [#allocation14], 128
    %s207 = ssub.s32 256, 1
    %208 = vst [vmem:[%s205] sm:%s207] %v204
    %s209 = scalar_lea.vmem %s3, 136
    %v210 = vld [vmem:[%s209] sm:$0xff]
    %v211 = vlaneseq
    %v212 = vand.u32 %v211, 127
    %vm214 = vcmp.lt.s32.totalorder %v212, 10
    %v215 = vsel %vm214, %v210, %v11
    %s216 = scalar_lea.vmem [#allocation14], 136
    %s218 = ssub.s32 256, 1
    %219 = vst [vmem:[%s216] sm:%s218] %v215
    %s220 = scalar_lea.vmem %s3, 144
    %v221 = vld [vmem:[%s220] sm:$0xff]
    %v222 = vlaneseq
    %v223 = vand.u32 %v222, 127
    %vm225 = vcmp.lt.s32.totalorder %v223, 10
    %v226 = vsel %vm225, %v221, %v11
    %s227 = scalar_lea.vmem [#allocation14], 144
    %s229 = ssub.s32 256, 1
    %230 = vst [vmem:[%s227] sm:%s229] %v226
    %s231 = scalar_lea.vmem %s3, 152
    %v232 = vld [vmem:[%s231] sm:$0xff]
    %v233 = vlaneseq
    %v234 = vand.u32 %v233, 127
    %vm236 = vcmp.lt.s32.totalorder %v234, 10
    %v237 = vsel %vm236, %v232, %v11
    %s238 = scalar_lea.vmem [#allocation14], 152
    %s240 = ssub.s32 256, 1
    %241 = vst [vmem:[%s238] sm:%s240] %v237
    %s242 = scalar_lea.vmem %s3, 160
    %v243 = vld [vmem:[%s242] sm:$0xff]
    %v244 = vlaneseq
    %v245 = vand.u32 %v244, 127
    %vm247 = vcmp.lt.s32.totalorder %v245, 10
    %v248 = vsel %vm247, %v243, %v11
    %s249 = scalar_lea.vmem [#allocation14], 160
    %s251 = ssub.s32 256, 1
    %252 = vst [vmem:[%s249] sm:%s251] %v248
    %s253 = scalar_lea.vmem %s3, 168
    %v254 = vld [vmem:[%s253] sm:$0xff]
    %v255 = vlaneseq
    %v256 = vand.u32 %v255, 127
    %vm258 = vcmp.lt.s32.totalorder %v256, 10
    %v259 = vsel %vm258, %v254, %v11
    %s260 = scalar_lea.vmem [#allocation14], 168
    %s262 = ssub.s32 256, 1
    %263 = vst [vmem:[%s260] sm:%s262] %v259
    %s264 = scalar_lea.vmem %s3, 176
    %v265 = vld [vmem:[%s264] sm:$0xff]
    %v266 = vlaneseq
    %v267 = vand.u32 %v266, 127
    %vm269 = vcmp.lt.s32.totalorder %v267, 10
    %v270 = vsel %vm269, %v265, %v11
    %s271 = scalar_lea.vmem [#allocation14], 176
    %s273 = ssub.s32 256, 1
    %274 = vst [vmem:[%s271] sm:%s273] %v270
    %s275 = scalar_lea.vmem %s3, 184
    %v276 = vld [vmem:[%s275] sm:$0xff]
    %v277 = vlaneseq
    %v278 = vand.u32 %v277, 127
    %vm280 = vcmp.lt.s32.totalorder %v278, 10
    %v281 = vsel %vm280, %v276, %v11
    %s282 = scalar_lea.vmem [#allocation14], 184
    %s284 = ssub.s32 256, 1
    %285 = vst [vmem:[%s282] sm:%s284] %v281
    %s286 = scalar_lea.vmem %s3, 192
    %v287 = vld [vmem:[%s286] sm:$0xff]
    %v288 = vlaneseq
    %v289 = vand.u32 %v288, 127
    %vm291 = vcmp.lt.s32.totalorder %v289, 10
    %v292 = vsel %vm291, %v287, %v11
    %s293 = scalar_lea.vmem [#allocation14], 192
    %s295 = ssub.s32 256, 1
    %296 = vst [vmem:[%s293] sm:%s295] %v292
    %s297 = scalar_lea.vmem %s3, 200
    %v298 = vld [vmem:[%s297] sm:$0xff]
    %v299 = vlaneseq
    %v300 = vand.u32 %v299, 127
    %vm302 = vcmp.lt.s32.totalorder %v300, 10
    %v303 = vsel %vm302, %v298, %v11
    %s304 = scalar_lea.vmem [#allocation14], 200
    %s306 = ssub.s32 256, 1
    %307 = vst [vmem:[%s304] sm:%s306] %v303
    %s308 = scalar_lea.vmem %s3, 208
    %v309 = vld [vmem:[%s308] sm:$0xff]
    %v310 = vlaneseq
    %v311 = vand.u32 %v310, 127
    %vm313 = vcmp.lt.s32.totalorder %v311, 10
    %v314 = vsel %vm313, %v309, %v11
    %s315 = scalar_lea.vmem [#allocation14], 208
    %s317 = ssub.s32 256, 1
    %318 = vst [vmem:[%s315] sm:%s317] %v314
    %s319 = scalar_lea.vmem %s3, 216
    %v320 = vld [vmem:[%s319] sm:$0xff]
    %v321 = vlaneseq
    %v322 = vand.u32 %v321, 127
    %vm324 = vcmp.lt.s32.totalorder %v322, 10
    %v325 = vsel %vm324, %v320, %v11
    %s326 = scalar_lea.vmem [#allocation14], 216
    %s328 = ssub.s32 256, 1
    %329 = vst [vmem:[%s326] sm:%s328] %v325
    %s330 = scalar_lea.vmem %s3, 224
    %v331 = vld [vmem:[%s330] sm:$0xff]
    %v332 = vlaneseq
    %v333 = vand.u32 %v332, 127
    %vm335 = vcmp.lt.s32.totalorder %v333, 10
    %v336 = vsel %vm335, %v331, %v11
    %s337 = scalar_lea.vmem [#allocation14], 224
    %s339 = ssub.s32 256, 1
    %340 = vst [vmem:[%s337] sm:%s339] %v336
    %s341 = scalar_lea.vmem %s3, 232
    %v342 = vld [vmem:[%s341] sm:$0xff]
    %v343 = vlaneseq
    %v344 = vand.u32 %v343, 127
    %vm346 = vcmp.lt.s32.totalorder %v344, 10
    %v347 = vsel %vm346, %v342, %v11
    %s348 = scalar_lea.vmem [#allocation14], 232
    %s350 = ssub.s32 256, 1
    %351 = vst [vmem:[%s348] sm:%s350] %v347
    %s352 = scalar_lea.vmem %s3, 240
    %v353 = vld [vmem:[%s352] sm:$0xff]
    %v354 = vlaneseq
    %v355 = vand.u32 %v354, 127
    %vm357 = vcmp.lt.s32.totalorder %v355, 10
    %v358 = vsel %vm357, %v353, %v11
    %s359 = scalar_lea.vmem [#allocation14], 240
    %s361 = ssub.s32 256, 1
    %362 = vst [vmem:[%s359] sm:%s361] %v358
    %s363 = scalar_lea.vmem %s3, 248
    %v364 = vld [vmem:[%s363] sm:$0xff]
    %v365 = vlaneseq
    %v366 = vand.u32 %v365, 127
    %vm368 = vcmp.lt.s32.totalorder %v366, 10
    %v369 = vsel %vm368, %v364, %v11
    %s370 = scalar_lea.vmem [#allocation14], 248
    %s372 = ssub.s32 256, 1
    %373 = vst [vmem:[%s370] sm:%s372] %v369
    %v374 = vld [vmem:[%s5] sm:$0x1]
    %v375 = vlaneseq
    %v376 = vshrl.u32 %v375, 7
    %vm378 = vcmp.lt.s32.totalorder %v376, 1
    %v379 = vsel %vm378, %v374, %v12
    %v380 = vlaneseq
    %v381 = vand.u32 %v380, 127
    %vm383 = vcmp.lt.s32.totalorder %v381, 10
    %v384 = vsel %vm383, %v379, %v12
    %s386 = ssub.s32 2, 1
    %387 = vst [vmem:[#allocation15] sm:%s386] %v384
    %v388 = vld [vmem:[%s0] sm:$0xf]
    %v389 = vld [vmem:[%s1] sm:$0xff]
    %v390 = vld [vmem:[%s1 + $0x8] sm:$0xff]
    %v391 = vld [vmem:[%s1 + $0x10] sm:$0xff]
    %v392 = vld [vmem:[%s1 + $0x18] sm:$0xff]
    %v393 = vld [vmem:[%s1 + $0x20] sm:$0xff]
    %v394 = vld [vmem:[%s1 + $0x28] sm:$0xff]
    %v395 = vld [vmem:[%s1 + $0x30] sm:$0xff]
    %v396 = vld [vmem:[%s1 + $0x38] sm:$0xff]
    %v397 = vld [vmem:[%s1 + $0x40] sm:$0xff]
    %v398 = vld [vmem:[%s1 + $0x48] sm:$0xff]
    %v399 = vld [vmem:[%s1 + $0x50] sm:$0xff]
    %v400 = vld [vmem:[%s1 + $0x58] sm:$0xff]
    %v401 = vld [vmem:[%s1 + $0x60] sm:$0xff]
    %v402 = vld [vmem:[%s1 + $0x68] sm:$0xff]
    %v403 = vld [vmem:[%s1 + $0x70] sm:$0xff]
    %v404 = vld [vmem:[%s1 + $0x78] sm:$0xff]
    %v405 = vld [vmem:[%s1 + $0x80] sm:$0xff]
    %v406 = vld [vmem:[%s1 + $0x88] sm:$0xff]
    %v407 = vld [vmem:[%s1 + $0x90] sm:$0xff]
    %v408 = vld [vmem:[%s1 + $0x98] sm:$0xff]
    %v409 = vld [vmem:[%s1 + $0xa0] sm:$0xff]
    %v410 = vld [vmem:[%s1 + $0xa8] sm:$0xff]
    %v411 = vld [vmem:[%s1 + $0xb0] sm:$0xff]
    %v412 = vld [vmem:[%s1 + $0xb8] sm:$0xff]
    %v413 = vld [vmem:[%s1 + $0xc0] sm:$0xff]
    %v414 = vld [vmem:[%s1 + $0xc8] sm:$0xff]
    %v415 = vld [vmem:[%s1 + $0xd0] sm:$0xff]
    %v416 = vld [vmem:[%s1 + $0xd8] sm:$0xff]
    %v417 = vld [vmem:[%s1 + $0xe0] sm:$0xff]
    %v418 = vld [vmem:[%s1 + $0xe8] sm:$0xff]
    %v419 = vld [vmem:[%s1 + $0xf0] sm:$0xff]
    %v420 = vld [vmem:[%s1 + $0xf8] sm:$0xff]
    %v421 = vld [vmem:[%s1 + $0x100] sm:$0xff]
    %v422 = vld [vmem:[%s1 + $0x108] sm:$0xff]
    %v423 = vld [vmem:[%s1 + $0x110] sm:$0xff]
    %v424 = vld [vmem:[%s1 + $0x118] sm:$0xff]
    %v425 = vld [vmem:[%s1 + $0x120] sm:$0xff]
    %v426 = vld [vmem:[%s1 + $0x128] sm:$0xff]
    %v427 = vld [vmem:[%s1 + $0x130] sm:$0xff]
    %v428 = vld [vmem:[%s1 + $0x138] sm:$0xff]
    %v429 = vld [vmem:[%s1 + $0x140] sm:$0xff]
    %v430 = vld [vmem:[%s1 + $0x148] sm:$0xff]
    %v431 = vld [vmem:[%s1 + $0x150] sm:$0xff]
    %v432 = vld [vmem:[%s1 + $0x158] sm:$0xff]
    %v433 = vld [vmem:[%s1 + $0x160] sm:$0xff]
    %v434 = vld [vmem:[%s1 + $0x168] sm:$0xff]
    %v435 = vld [vmem:[%s1 + $0x170] sm:$0xff]
    %v436 = vld [vmem:[%s1 + $0x178] sm:$0xff]
    %v437 = vld [vmem:[%s1 + $0x180] sm:$0xff]
    %v438 = vld [vmem:[%s1 + $0x188] sm:$0xff]
    %v439 = vld [vmem:[%s1 + $0x190] sm:$0xff]
    %v440 = vld [vmem:[%s1 + $0x198] sm:$0xff]
    %v441 = vld [vmem:[%s1 + $0x1a0] sm:$0xff]
    %v442 = vld [vmem:[%s1 + $0x1a8] sm:$0xff]
    %v443 = vld [vmem:[%s1 + $0x1b0] sm:$0xff]
    %v444 = vld [vmem:[%s1 + $0x1b8] sm:$0xff]
    %v445 = vld [vmem:[%s1 + $0x1c0] sm:$0xff]
    %v446 = vld [vmem:[%s1 + $0x1c8] sm:$0xff]
    %v447 = vld [vmem:[%s1 + $0x1d0] sm:$0xff]
    %v448 = vld [vmem:[%s1 + $0x1d8] sm:$0xff]
    %v449 = vld [vmem:[%s1 + $0x1e0] sm:$0xff]
    %v450 = vld [vmem:[%s1 + $0x1e8] sm:$0xff]
    %v451 = vld [vmem:[%s1 + $0x1f0] sm:$0xff]
    %v452 = vld [vmem:[%s1 + $0x1f8] sm:$0xff]
    %v453 = vld [vmem:[%s2] sm:$0x3]
    %v455 = vperm.slane %v453, 0
    %v456 = vperm.slane %v453, 1
    %460 = vst [vmem:[#allocation1] ss:$4 sm:$0xff] %v388
    %v461 = vld.sshfl [vmem:[#allocation1] sm:$0xff pattern:$0x73625140]
    %v462 = vld.sshfl [vmem:[#allocation1 + $0x8] sm:$0xff pattern:$0x73625140]
    %465 = vmatpush.msra.mxu0 %v419
    %466 = vmatpush.msra.mxu0 %v417
    %467 = vmatpush.msra.mxu0 %v415
    %468 = vmatpush.msra.mxu0 %v413
    %469 = vmatpush.msra.mxu0 %v411
    %470 = vmatpush.msra.mxu0 %v409
    %471 = vmatpush.msra.mxu0 %v407
    %472 = vmatpush.msra.mxu0 %v405
    %473 = vmatpush.msra.mxu0 %v403
    %474 = vmatpush.msra.mxu0 %v401
    %475 = vmatpush.msra.mxu0 %v399
    %476 = vmatpush.msra.mxu0 %v397
    %477 = vmatpush.msra.mxu0 %v395
    %478 = vmatpush.msra.mxu0 %v393
    %479 = vmatpush.msra.mxu0 %v391
    %480 = vmatpush.msra.mxu0 %v389
    %481 = vmatmul.f32.gmra.mxu0 %v461
    %v482 = vpop.f32.mrf.mxu0
    %v483 = vadd.f32 %v455, %v482
    %484 = vdwg.mxu0
    %485 = vmatpush.msra.mxu0 %v451
    %486 = vmatpush.msra.mxu0 %v449
    %487 = vmatpush.msra.mxu0 %v447
    %488 = vmatpush.msra.mxu0 %v445
    %489 = vmatpush.msra.mxu0 %v443
    %490 = vmatpush.msra.mxu0 %v441
    %491 = vmatpush.msra.mxu0 %v439
    %492 = vmatpush.msra.mxu0 %v437
    %493 = vmatpush.msra.mxu0 %v435
    %494 = vmatpush.msra.mxu0 %v433
    %495 = vmatpush.msra.mxu0 %v431
    %496 = vmatpush.msra.mxu0 %v429
    %497 = vmatpush.msra.mxu0 %v427
    %498 = vmatpush.msra.mxu0 %v425
    %499 = vmatpush.msra.mxu0 %v423
    %500 = vmatpush.msra.mxu0 %v421
    %501 = vmatmul.f32.gmra.mxu0 %v462
    %v502 = vpop.f32.mrf.mxu0
    %v503 = vadd.f32 %v483, %v502
    %504 = vdwg.mxu0
    %505 = vmatpush.msra.mxu0 %v420
    %506 = vmatpush.msra.mxu0 %v418
    %507 = vmatpush.msra.mxu0 %v416
    %508 = vmatpush.msra.mxu0 %v414
    %509 = vmatpush.msra.mxu0 %v412
    %510 = vmatpush.msra.mxu0 %v410
    %511 = vmatpush.msra.mxu0 %v408
    %512 = vmatpush.msra.mxu0 %v406
    %513 = vmatpush.msra.mxu0 %v404
    %514 = vmatpush.msra.mxu0 %v402
    %515 = vmatpush.msra.mxu0 %v400
    %516 = vmatpush.msra.mxu0 %v398
    %517 = vmatpush.msra.mxu0 %v396
    %518 = vmatpush.msra.mxu0 %v394
    %519 = vmatpush.msra.mxu0 %v392
    %520 = vmatpush.msra.mxu0 %v390
    %521 = vmatmul.f32.gmra.mxu0 %v461
    %v522 = vpop.f32.mrf.mxu0
    %v523 = vadd.f32 %v456, %v522
    %524 = vdwg.mxu0
    %525 = vmatpush.msra.mxu0 %v452
    %526 = vmatpush.msra.mxu0 %v450
    %527 = vmatpush.msra.mxu0 %v448
    %528 = vmatpush.msra.mxu0 %v446
    %529 = vmatpush.msra.mxu0 %v444
    %530 = vmatpush.msra.mxu0 %v442
    %531 = vmatpush.msra.mxu0 %v440
    %532 = vmatpush.msra.mxu0 %v438
    %533 = vmatpush.msra.mxu0 %v436
    %534 = vmatpush.msra.mxu0 %v434
    %535 = vmatpush.msra.mxu0 %v432
    %536 = vmatpush.msra.mxu0 %v430
    %537 = vmatpush.msra.mxu0 %v428
    %538 = vmatpush.msra.mxu0 %v426
    %539 = vmatpush.msra.mxu0 %v424
    %540 = vmatpush.msra.mxu0 %v422
    %541 = vmatmul.f32.gmra.mxu0 %v462
    %v542 = vpop.f32.mrf.mxu0
    %v543 = vadd.f32 %v523, %v542
    %544 = vdwg.mxu0
    %v545 = vmax.f32 %v503, 0.0
    %v546 = vmax.f32 %v543, 0.0
    %v547 = vld [vmem:[#allocation14] sm:$0xff]
    %v548 = vld [vmem:[#allocation14 + $0x8] sm:$0xff]
    %v549 = vld [vmem:[#allocation14 + $0x10] sm:$0xff]
    %v550 = vld [vmem:[#allocation14 + $0x18] sm:$0xff]
    %v551 = vld [vmem:[#allocation14 + $0x20] sm:$0xff]
    %v552 = vld [vmem:[#allocation14 + $0x28] sm:$0xff]
    %v553 = vld [vmem:[#allocation14 + $0x30] sm:$0xff]
    %v554 = vld [vmem:[#allocation14 + $0x38] sm:$0xff]
    %v555 = vld [vmem:[#allocation14 + $0x40] sm:$0xff]
    %v556 = vld [vmem:[#allocation14 + $0x48] sm:$0xff]
    %v557 = vld [vmem:[#allocation14 + $0x50] sm:$0xff]
    %v558 = vld [vmem:[#allocation14 + $0x58] sm:$0xff]
    %v559 = vld [vmem:[#allocation14 + $0x60] sm:$0xff]
    %v560 = vld [vmem:[#allocation14 + $0x68] sm:$0xff]
    %v561 = vld [vmem:[#allocation14 + $0x70] sm:$0xff]
    %v562 = vld [vmem:[#allocation14 + $0x78] sm:$0xff]
    %v563 = vld [vmem:[#allocation14 + $0x80] sm:$0xff]
    %v564 = vld [vmem:[#allocation14 + $0x88] sm:$0xff]
    %v565 = vld [vmem:[#allocation14 + $0x90] sm:$0xff]
    %v566 = vld [vmem:[#allocation14 + $0x98] sm:$0xff]
    %v567 = vld [vmem:[#allocation14 + $0xa0] sm:$0xff]
    %v568 = vld [vmem:[#allocation14 + $0xa8] sm:$0xff]
    %v569 = vld [vmem:[#allocation14 + $0xb0] sm:$0xff]
    %v570 = vld [vmem:[#allocation14 + $0xb8] sm:$0xff]
    %v571 = vld [vmem:[#allocation14 + $0xc0] sm:$0xff]
    %v572 = vld [vmem:[#allocation14 + $0xc8] sm:$0xff]
    %v573 = vld [vmem:[#allocation14 + $0xd0] sm:$0xff]
    %v574 = vld [vmem:[#allocation14 + $0xd8] sm:$0xff]
    %v575 = vld [vmem:[#allocation14 + $0xe0] sm:$0xff]
    %v576 = vld [vmem:[#allocation14 + $0xe8] sm:$0xff]
    %v577 = vld [vmem:[#allocation14 + $0xf0] sm:$0xff]
    %v578 = vld [vmem:[#allocation14 + $0xf8] sm:$0xff]
    %v579 = vld [vmem:[#allocation15] sm:$0x1]
    %v581 = vperm.slane %v579, 0
    %583 = vmatpush.msra.mxu0 %v562
    %584 = vmatpush.msra.mxu0 %v561
    %585 = vmatpush.msra.mxu0 %v560
    %586 = vmatpush.msra.mxu0 %v559
    %587 = vmatpush.msra.mxu0 %v558
    %588 = vmatpush.msra.mxu0 %v557
    %589 = vmatpush.msra.mxu0 %v556
    %590 = vmatpush.msra.mxu0 %v555
    %591 = vmatpush.msra.mxu0 %v554
    %592 = vmatpush.msra.mxu0 %v553
    %593 = vmatpush.msra.mxu0 %v552
    %594 = vmatpush.msra.mxu0 %v551
    %595 = vmatpush.msra.mxu0 %v550
    %596 = vmatpush.msra.mxu0 %v549
    %597 = vmatpush.msra.mxu0 %v548
    %598 = vmatpush.msra.mxu0 %v547
    %599 = vmatmul.f32.gmra.mxu0 %v545
    %v600 = vpop.f32.mrf.mxu0
    %v601 = vadd.f32 %v581, %v600
    %602 = vdwg.mxu0
    %603 = vmatpush.msra.mxu0 %v578
    %604 = vmatpush.msra.mxu0 %v577
    %605 = vmatpush.msra.mxu0 %v576
    %606 = vmatpush.msra.mxu0 %v575
    %607 = vmatpush.msra.mxu0 %v574
    %608 = vmatpush.msra.mxu0 %v573
    %609 = vmatpush.msra.mxu0 %v572
    %610 = vmatpush.msra.mxu0 %v571
    %611 = vmatpush.msra.mxu0 %v570
    %612 = vmatpush.msra.mxu0 %v569
    %613 = vmatpush.msra.mxu0 %v568
    %614 = vmatpush.msra.mxu0 %v567
    %615 = vmatpush.msra.mxu0 %v566
    %616 = vmatpush.msra.mxu0 %v565
    %617 = vmatpush.msra.mxu0 %v564
    %618 = vmatpush.msra.mxu0 %v563
    %619 = vmatmul.f32.gmra.mxu0 %v546
    %v620 = vpop.f32.mrf.mxu0
    %v621 = vadd.f32 %v601, %v620
    %622 = vdwg.mxu0
    %623 = vst [vmem:[#allocation12] sm:$0x3] %v621
    // Predicated region
    $region22: #{dummy_model_forward.2} parent=1 // pred_check
      _
    $region23: #{dummy_model_forward.2} parent=1 // pred_check_branch
      %625 = sbr.rel (0) target = $region25
    $region24: #{dummy_model_forward.2} parent=1 // pred_region
      %627 = vsyncadd [#allocation13], 0
      %s629 = sshll.u32 [#allocation12], 4
      %s630 = int_to_ptr.vmem [resolvable:$true] %s629
      %s631 = sshll.u32 %s6, 4
      %s632 = int_to_ptr.hbm [resolvable:$true] %s631
      %634 = dma.vmem_to_hbm [thread:$0]  %s630, 32, %s632, [#allocation13]
    $region25: #{dummy_model_forward.2} parent=1 // pred_fallthru
      _
    // Predicated region
    $region26: #{dummy_model_forward.2} parent=1 // pred_check
      _
    $region27: #{dummy_model_forward.2} parent=1 // pred_check_branch
      %636 = sbr.rel (0) target = $region29
    $region28: #{dummy_model_forward.2} parent=1 // pred_region
      %638 = dma.done [#allocation13], 32
    $region29: #{dummy_model_forward.2} parent=1 // pred_fallthru
      _
    %639 = vsyncpa [#allocation13], 1

</llo_original>
